<compile_context>
chip_gen: v6e
topology: v6e:2x2x1
jax: 0.10.0
libtpu: 0.0.40
codegen_flags: <defaults>
</compile_context>

<pallas_src>
import functools

import jax
import jax.numpy as jnp
from jax.experimental import pallas as pl
from jax.experimental.pallas import tpu as pltpu


def _round_up(n: int, m: int) -> int:
    return (n + m - 1) // m * m


# ----------------------------- Pallas kernel --------------------------------
def dcn_kernel(x_ref,                      # [D, TB]   bf16 (batch on lanes)
               u0_ref, v0_ref, cb0_ref,    # [R, D] bf16, [D, R] bf16, [D, 1] f32
               u1_ref, v1_ref, cb1_ref,
               w1_ref, b1_ref,             # [H1, D] bf16, [H1, 1] f32
               w2_ref, b2_ref,             # [H2, H1] bf16, [H2, 1] f32
               wo_ref, bo_ref,             # [H2, 1] f32, [1, 1] f32
               out_ref):                   # [1, TB]   f32 (lane-dense)
    bf16 = jnp.bfloat16
    f32 = jnp.float32

    x0_bf = x_ref[...]                      # bf16 [D, TB]
    x0 = x0_bf.astype(f32)
    xc = x0

    # ---- low-rank cross layer 0: xc = x0 * V(U(xc)) + xc + bias   (bias outside the Hadamard, per spec)
    t = jnp.dot(u0_ref[...], x0_bf, preferred_element_type=f32)            # [R, TB]
    t = jnp.dot(v0_ref[...], t.astype(bf16), preferred_element_type=f32)   # [D, TB]
    xc = x0 * t + xc + cb0_ref[...]

    # ---- low-rank cross layer 1
    xc_bf = xc.astype(bf16)
    t = jnp.dot(u1_ref[...], xc_bf, preferred_element_type=f32)
    t = jnp.dot(v1_ref[...], t.astype(bf16), preferred_element_type=f32)
    xc = x0 * t + xc + cb1_ref[...]

    # ---- deep network: Linear -> ReLU -> Linear -> ReLU
    h = jnp.dot(w1_ref[...], xc.astype(bf16), preferred_element_type=f32) + b1_ref[...]
    h = jnp.maximum(h, 0.0)
    h = jnp.dot(w2_ref[...], h.astype(bf16), preferred_element_type=f32) + b2_ref[...]
    h = jnp.maximum(h, 0.0)

    # ---- output head: VPU multiply + sublane reduce (avoids an N=1 MXU matmul)
    logit = jnp.sum(h * wo_ref[...], axis=0, keepdims=True) + bo_ref[...]   # [1, TB]
    out_ref[...] = jax.nn.sigmoid(logit)


# ------------------------------- wrapper -------------------------------------
def dcnv2_forward(params, num_features, cat_features, one_hot_features, *, tile_b=512):
    """Full DCNv2 forward.  Embedding gather + concat is glue; the rest is Pallas."""
    # glue: embedding lookups + concat (stays inside the same jit -> fused, no extra HBM round trip)
    embedded = [jnp.take(tbl, cat_features[:, i], axis=0)
                for i, tbl in enumerate(params["emb_tables"])]
    x = jnp.concatenate([num_features] + embedded + [one_hot_features], axis=1)
    B, D = x.shape

    tb = min(tile_b, _round_up(B, 128))
    Bp = _round_up(B, tb)

    # feature-major bf16 activation: [D, Bp], batch on the lane axis
    x_fm = x.T.astype(jnp.bfloat16)
    if Bp != B:
        x_fm = jnp.pad(x_fm, ((0, 0), (0, Bp - B)))

    (u0, v0, cb0), (u1, v1, cb1) = params["cross"]
    w1, b1 = params["deep1"]
    w2, b2 = params["deep2"]
    wo, bo = params["out"]

    bf16, f32 = jnp.bfloat16, jnp.float32
    args = (
        x_fm,
        u0.astype(bf16), v0.astype(bf16), cb0.reshape(-1, 1).astype(f32),
        u1.astype(bf16), v1.astype(bf16), cb1.reshape(-1, 1).astype(f32),
        w1.astype(bf16), b1.reshape(-1, 1).astype(f32),
        w2.astype(bf16), b2.reshape(-1, 1).astype(f32),
        wo.reshape(-1, 1).astype(f32), bo.reshape(1, 1).astype(f32),
    )

    x_spec = pl.BlockSpec((D, tb), lambda i: (0, i))
    # weights/biases: full-array, grid-invariant blocks -> DMA'd once, VMEM-resident across steps
    w_specs = [pl.BlockSpec(a.shape, lambda i: (0, 0)) for a in args[1:]]
    out_spec = pl.BlockSpec((1, tb), lambda i: (0, i))

    out = pl.pallas_call(
        dcn_kernel,
        out_shape=jax.ShapeDtypeStruct((1, Bp), jnp.float32),
        grid=(Bp // tb,),
        in_specs=[x_spec] + w_specs,
        out_specs=out_spec,
        compiler_params=pltpu.CompilerParams(
            dimension_semantics=("parallel",)),
    )(*args)
    return out[0, :B]          # matches torch .squeeze() on [B, 1] -> [B]


# -------------------------- pure-JAX fp32 reference --------------------------
def dcnv2_reference(params, num_features, cat_features, one_hot_features):
    embedded = [jnp.take(tbl, cat_features[:, i], axis=0)
                for i, tbl in enumerate(params["emb_tables"])]
    x = jnp.concatenate([num_features] + embedded + [one_hot_features], axis=1).astype(jnp.float32)
    xc = x
    for (u, v, cb) in params["cross"]:
        xc = x * ((xc @ u.T) @ v.T) + xc + cb       # bias outside the Hadamard (matches the torch module)
    w1, b1 = params["deep1"]
    w2, b2 = params["deep2"]
    wo, bo = params["out"]
    h = jnp.maximum(xc @ w1.T + b1, 0.0)
    h = jnp.maximum(h @ w2.T + b2, 0.0)
    return jax.nn.sigmoid(h @ wo.T + bo).squeeze()


# ------------------------------- main -----------------------------------------
if __name__ == "__main__":
    key = jax.random.PRNGKey(0)

    # model config (small, consistent with the module's __init__)
    num_numerical = 4
    embedding_sizes = [(10, 4), (20, 4), (30, 8)]     # (num_categories, emb_size)
    num_one_hot = 6
    rank = 8
    n_cross = 2
    deep_layers = (32, 16)
    input_size = num_numerical + sum(e for _, e in embedding_sizes) + num_one_hot  # 26
    batch = 256                                       # small, but exercises the batch grid

    # deterministic parameter init
    keys = iter(jax.random.split(key, 32))
    params = {}
    params["emb_tables"] = [
        jax.random.normal(next(keys), (nc + 1, es), jnp.float32) * 0.1
        for nc, es in embedding_sizes
    ]
    cross = []
    for _ in range(n_cross):
        u = jax.random.normal(next(keys), (rank, input_size), jnp.float32) * 0.1   # U: Linear(D, rank).weight
        v = jax.random.normal(next(keys), (input_size, rank), jnp.float32) * 0.1   # V: Linear(rank, D).weight
        cb = jax.random.normal(next(keys), (input_size,), jnp.float32) * 0.1       # nonzero: tests bias placement
        cross.append((u, v, cb))
    params["cross"] = cross
    params["deep1"] = (
        jax.random.normal(next(keys), (deep_layers[0], input_size), jnp.float32) * 0.1,
        jax.random.normal(next(keys), (deep_layers[0],), jnp.float32) * 0.01,
    )
    params["deep2"] = (
        jax.random.normal(next(keys), (deep_layers[1], deep_layers[0]), jnp.float32) * 0.1,
        jax.random.normal(next(keys), (deep_layers[1],), jnp.float32) * 0.01,
    )
    params["out"] = (
        jax.random.normal(next(keys), (1, deep_layers[1]), jnp.float32) * 0.1,
        jax.random.normal(next(keys), (1,), jnp.float32) * 0.01,
    )

    # deterministic inputs
    num_features = jax.random.normal(next(keys), (batch, num_numerical), jnp.float32)
    cat_features = jnp.stack(
        [jax.random.randint(next(keys), (batch,), 0, nc + 1)
         for nc, _ in embedding_sizes], axis=1).astype(jnp.int32)
    one_hot_features = jax.nn.one_hot(
        jax.random.randint(next(keys), (batch,), 0, num_one_hot), num_one_hot,
        dtype=jnp.float32)

    # tile_b=128 -> 2 grid steps at batch=256; production would use 512-4096.
    fwd = jax.jit(functools.partial(dcnv2_forward, tile_b=128))
    out = jax.block_until_ready(fwd(params, num_features, cat_features, one_hot_features))

    ref = dcnv2_reference(params, num_features, cat_features, one_hot_features)
    assert out.shape == (batch,), out.shape
    # bf16 matmul inputs -> relaxed tolerance vs the fp32 reference
    assert jnp.allclose(out, ref, atol=3e-2, rtol=3e-2), float(jnp.max(jnp.abs(out - ref)))

    print("KERNEL_OK")
</pallas_src>

<mosaic_0001>
module attributes {stable_mosaic.version = 11 : i64} {
  func.func @dcn_kernel(%arg0: i32, %arg1: memref<26x128xbf16, #tpu.memory_space<vmem>>, %arg2: memref<8x26xbf16, #tpu.memory_space<vmem>>, %arg3: memref<26x8xbf16, #tpu.memory_space<vmem>>, %arg4: memref<26x1xf32, #tpu.memory_space<vmem>>, %arg5: memref<8x26xbf16, #tpu.memory_space<vmem>>, %arg6: memref<26x8xbf16, #tpu.memory_space<vmem>>, %arg7: memref<26x1xf32, #tpu.memory_space<vmem>>, %arg8: memref<32x26xbf16, #tpu.memory_space<vmem>>, %arg9: memref<32x1xf32, #tpu.memory_space<vmem>>, %arg10: memref<16x32xbf16, #tpu.memory_space<vmem>>, %arg11: memref<16x1xf32, #tpu.memory_space<vmem>>, %arg12: memref<16x1xf32, #tpu.memory_space<vmem>>, %arg13: memref<1x1xf32, #tpu.memory_space<vmem>>, %arg14: memref<1x128xf32, #tpu.memory_space<vmem>>) attributes {dimension_semantics = [#tpu.dimension_semantics<parallel>], iteration_bounds = array<i64: 2>, scalar_prefetch = 0 : i64, scratch_operands = 0 : i64, tpu.core_type = #tpu.core_type<tc>, window_params = [{transform_indices = @transform_0, window_bounds = array<i64: 26, 128>}, {pipeline_mode = #tpu.pipeline_mode<synchronous>, transform_indices = @transform_1, window_bounds = array<i64: 8, 26>}, {pipeline_mode = #tpu.pipeline_mode<synchronous>, transform_indices = @transform_2, window_bounds = array<i64: 26, 8>}, {pipeline_mode = #tpu.pipeline_mode<synchronous>, transform_indices = @transform_3, window_bounds = array<i64: 26, 1>}, {pipeline_mode = #tpu.pipeline_mode<synchronous>, transform_indices = @transform_4, window_bounds = array<i64: 8, 26>}, {pipeline_mode = #tpu.pipeline_mode<synchronous>, transform_indices = @transform_5, window_bounds = array<i64: 26, 8>}, {pipeline_mode = #tpu.pipeline_mode<synchronous>, transform_indices = @transform_6, window_bounds = array<i64: 26, 1>}, {pipeline_mode = #tpu.pipeline_mode<synchronous>, transform_indices = @transform_7, window_bounds = array<i64: 32, 26>}, {pipeline_mode = #tpu.pipeline_mode<synchronous>, transform_indices = @transform_8, window_bounds = array<i64: 32, 1>}, {pipeline_mode = #tpu.pipeline_mode<synchronous>, transform_indices = @transform_9, window_bounds = array<i64: 16, 32>}, {pipeline_mode = #tpu.pipeline_mode<synchronous>, transform_indices = @transform_10, window_bounds = array<i64: 16, 1>}, {pipeline_mode = #tpu.pipeline_mode<synchronous>, transform_indices = @transform_11, window_bounds = array<i64: 16, 1>}, {pipeline_mode = #tpu.pipeline_mode<synchronous>, transform_indices = @transform_12, window_bounds = array<i64: 1, 1>}, {transform_indices = @transform_13, window_bounds = array<i64: 1, 128>}]} {
    %c0 = arith.constant 0 : index
    %c0_0 = arith.constant 0 : index
    %0 = vector.load %arg1[%c0, %c0_0] : memref<26x128xbf16, #tpu.memory_space<vmem>>, vector<26x128xbf16>
    %1 = arith.extf %0 : vector<26x128xbf16> to vector<26x128xf32>
    %c0_1 = arith.constant 0 : index
    %c0_2 = arith.constant 0 : index
    %2 = vector.load %arg2[%c0_1, %c0_2] : memref<8x26xbf16, #tpu.memory_space<vmem>>, vector<8x26xbf16>
    %cst = arith.constant dense<0.000000e+00> : vector<8x128xf32>
    %3 = tpu.matmul %2, %0, %cst {dimension_numbers = #tpu.dot_dimension_numbers<[1], [0], [0], [1], [0, 0, 1, 1], [], []>} : vector<8x26xbf16>, vector<26x128xbf16>, vector<8x128xf32> -> vector<8x128xf32>
    %c0_3 = arith.constant 0 : index
    %c0_4 = arith.constant 0 : index
    %4 = vector.load %arg3[%c0_3, %c0_4] : memref<26x8xbf16, #tpu.memory_space<vmem>>, vector<26x8xbf16>
    %5 = arith.truncf %3 : vector<8x128xf32> to vector<8x128xbf16>
    %cst_5 = arith.constant dense<0.000000e+00> : vector<26x128xf32>
    %6 = tpu.matmul %4, %5, %cst_5 {dimension_numbers = #tpu.dot_dimension_numbers<[1], [0], [0], [1], [0, 0, 1, 1], [], []>} : vector<26x8xbf16>, vector<8x128xbf16>, vector<26x128xf32> -> vector<26x128xf32>
    %7 = arith.mulf %1, %6 : vector<26x128xf32>
    %8 = arith.addf %7, %1 : vector<26x128xf32>
    %c0_6 = arith.constant 0 : index
    %c0_7 = arith.constant 0 : index
    %9 = vector.load %arg4[%c0_6, %c0_7] : memref<26x1xf32, #tpu.memory_space<vmem>>, vector<26x1xf32>
    %10 = vector.broadcast %9 : vector<26x1xf32> to vector<26x128xf32>
    %11 = arith.addf %8, %10 : vector<26x128xf32>
    %12 = arith.truncf %11 : vector<26x128xf32> to vector<26x128xbf16>
    %c0_8 = arith.constant 0 : index
    %c0_9 = arith.constant 0 : index
    %13 = vector.load %arg5[%c0_8, %c0_9] : memref<8x26xbf16, #tpu.memory_space<vmem>>, vector<8x26xbf16>
    %cst_10 = arith.constant dense<0.000000e+00> : vector<8x128xf32>
    %14 = tpu.matmul %13, %12, %cst_10 {dimension_numbers = #tpu.dot_dimension_numbers<[1], [0], [0], [1], [0, 0, 1, 1], [], []>} : vector<8x26xbf16>, vector<26x128xbf16>, vector<8x128xf32> -> vector<8x128xf32>
    %c0_11 = arith.constant 0 : index
    %c0_12 = arith.constant 0 : index
    %15 = vector.load %arg6[%c0_11, %c0_12] : memref<26x8xbf16, #tpu.memory_space<vmem>>, vector<26x8xbf16>
    %16 = arith.truncf %14 : vector<8x128xf32> to vector<8x128xbf16>
    %cst_13 = arith.constant dense<0.000000e+00> : vector<26x128xf32>
    %17 = tpu.matmul %15, %16, %cst_13 {dimension_numbers = #tpu.dot_dimension_numbers<[1], [0], [0], [1], [0, 0, 1, 1], [], []>} : vector<26x8xbf16>, vector<8x128xbf16>, vector<26x128xf32> -> vector<26x128xf32>
    %18 = arith.mulf %1, %17 : vector<26x128xf32>
    %19 = arith.addf %18, %11 : vector<26x128xf32>
    %c0_14 = arith.constant 0 : index
    %c0_15 = arith.constant 0 : index
    %20 = vector.load %arg7[%c0_14, %c0_15] : memref<26x1xf32, #tpu.memory_space<vmem>>, vector<26x1xf32>
    %21 = vector.broadcast %20 : vector<26x1xf32> to vector<26x128xf32>
    %22 = arith.addf %19, %21 : vector<26x128xf32>
    %c0_16 = arith.constant 0 : index
    %c0_17 = arith.constant 0 : index
    %23 = vector.load %arg8[%c0_16, %c0_17] : memref<32x26xbf16, #tpu.memory_space<vmem>>, vector<32x26xbf16>
    %24 = arith.truncf %22 : vector<26x128xf32> to vector<26x128xbf16>
    %cst_18 = arith.constant dense<0.000000e+00> : vector<32x128xf32>
    %25 = tpu.matmul %23, %24, %cst_18 {dimension_numbers = #tpu.dot_dimension_numbers<[1], [0], [0], [1], [0, 0, 1, 1], [], []>} : vector<32x26xbf16>, vector<26x128xbf16>, vector<32x128xf32> -> vector<32x128xf32>
    %c0_19 = arith.constant 0 : index
    %c0_20 = arith.constant 0 : index
    %26 = vector.load %arg9[%c0_19, %c0_20] : memref<32x1xf32, #tpu.memory_space<vmem>>, vector<32x1xf32>
    %27 = vector.broadcast %26 : vector<32x1xf32> to vector<32x128xf32>
    %28 = arith.addf %25, %27 : vector<32x128xf32>
    %cst_21 = arith.constant 0.000000e+00 : f32
    %29 = vector.broadcast %cst_21 : f32 to vector<32x128xf32>
    %30 = arith.maximumf %28, %29 : vector<32x128xf32>
    %c0_22 = arith.constant 0 : index
    %c0_23 = arith.constant 0 : index
    %31 = vector.load %arg10[%c0_22, %c0_23] : memref<16x32xbf16, #tpu.memory_space<vmem>>, vector<16x32xbf16>
    %32 = arith.truncf %30 : vector<32x128xf32> to vector<32x128xbf16>
    %cst_24 = arith.constant dense<0.000000e+00> : vector<16x128xf32>
    %33 = tpu.matmul %31, %32, %cst_24 {dimension_numbers = #tpu.dot_dimension_numbers<[1], [0], [0], [1], [0, 0, 1, 1], [], []>} : vector<16x32xbf16>, vector<32x128xbf16>, vector<16x128xf32> -> vector<16x128xf32>
    %c0_25 = arith.constant 0 : index
    %c0_26 = arith.constant 0 : index
    %34 = vector.load %arg11[%c0_25, %c0_26] : memref<16x1xf32, #tpu.memory_space<vmem>>, vector<16x1xf32>
    %35 = vector.broadcast %34 : vector<16x1xf32> to vector<16x128xf32>
    %36 = arith.addf %33, %35 : vector<16x128xf32>
    %cst_27 = arith.constant 0.000000e+00 : f32
    %37 = vector.broadcast %cst_27 : f32 to vector<16x128xf32>
    %38 = arith.maximumf %36, %37 : vector<16x128xf32>
    %c0_28 = arith.constant 0 : index
    %c0_29 = arith.constant 0 : index
    %39 = vector.load %arg12[%c0_28, %c0_29] : memref<16x1xf32, #tpu.memory_space<vmem>>, vector<16x1xf32>
    %40 = vector.broadcast %39 : vector<16x1xf32> to vector<16x128xf32>
    %41 = arith.mulf %38, %40 : vector<16x128xf32>
    %cst_30 = arith.constant dense<0.000000e+00> : vector<128xf32>
    %42 = vector.multi_reduction <add>, %41, %cst_30 [0] : vector<16x128xf32> to vector<128xf32>
    %43 = vector.shape_cast %42 : vector<128xf32> to vector<1x128xf32>
    %c0_31 = arith.constant 0 : index
    %c0_32 = arith.constant 0 : index
    %44 = vector.load %arg13[%c0_31, %c0_32] : memref<1x1xf32, #tpu.memory_space<vmem>>, vector<1x1xf32>
    %45 = vector.broadcast %44 : vector<1x1xf32> to vector<1x128xf32>
    %46 = arith.addf %43, %45 : vector<1x128xf32>
    %47 = arith.negf %46 : vector<1x128xf32>
    %48 = math.exp %47 : vector<1x128xf32>
    %cst_33 = arith.constant 1.000000e+00 : f32
    %49 = vector.broadcast %cst_33 : f32 to vector<1x128xf32>
    %50 = arith.addf %49, %48 : vector<1x128xf32>
    %51 = arith.divf %49, %50 : vector<1x128xf32>
    %c0_34 = arith.constant 0 : index
    %c0_35 = arith.constant 0 : index
    %52 = vector.load %arg14[%c0_34, %c0_35] : memref<1x128xf32, #tpu.memory_space<vmem>>, vector<1x128xf32>
    tpu.vector_store %arg14[%c0_34, %c0_35], %51 {strides = array<i32>} : memref<1x128xf32, #tpu.memory_space<vmem>>, vector<1x128xf32>,
    return
  }
  func.func @transform_0(%arg0: i32) -> (i32, i32) {
    %c0_i32 = arith.constant 0 : i32
    %c0_i32_0 = arith.constant 0 : i32
    return %c0_i32, %arg0 : i32, i32
  }
  func.func @transform_1(%arg0: i32) -> (i32, i32) {
    %c0_i32 = arith.constant 0 : i32
    %c0_i32_0 = arith.constant 0 : i32
    %c0_i32_1 = arith.constant 0 : i32
    return %c0_i32, %c0_i32_0 : i32, i32
  }
  func.func @transform_2(%arg0: i32) -> (i32, i32) {
    %c0_i32 = arith.constant 0 : i32
    %c0_i32_0 = arith.constant 0 : i32
    %c0_i32_1 = arith.constant 0 : i32
    return %c0_i32, %c0_i32_0 : i32, i32
  }
  func.func @transform_3(%arg0: i32) -> (i32, i32) {
    %c0_i32 = arith.constant 0 : i32
    %c0_i32_0 = arith.constant 0 : i32
    %c0_i32_1 = arith.constant 0 : i32
    return %c0_i32, %c0_i32_0 : i32, i32
  }
  func.func @transform_4(%arg0: i32) -> (i32, i32) {
    %c0_i32 = arith.constant 0 : i32
    %c0_i32_0 = arith.constant 0 : i32
    %c0_i32_1 = arith.constant 0 : i32
    return %c0_i32, %c0_i32_0 : i32, i32
  }
  func.func @transform_5(%arg0: i32) -> (i32, i32) {
    %c0_i32 = arith.constant 0 : i32
    %c0_i32_0 = arith.constant 0 : i32
    %c0_i32_1 = arith.constant 0 : i32
    return %c0_i32, %c0_i32_0 : i32, i32
  }
  func.func @transform_6(%arg0: i32) -> (i32, i32) {
    %c0_i32 = arith.constant 0 : i32
    %c0_i32_0 = arith.constant 0 : i32
    %c0_i32_1 = arith.constant 0 : i32
    return %c0_i32, %c0_i32_0 : i32, i32
  }
  func.func @transform_7(%arg0: i32) -> (i32, i32) {
    %c0_i32 = arith.constant 0 : i32
    %c0_i32_0 = arith.constant 0 : i32
    %c0_i32_1 = arith.constant 0 : i32
    return %c0_i32, %c0_i32_0 : i32, i32
  }
  func.func @transform_8(%arg0: i32) -> (i32, i32) {
    %c0_i32 = arith.constant 0 : i32
    %c0_i32_0 = arith.constant 0 : i32
    %c0_i32_1 = arith.constant 0 : i32
    return %c0_i32, %c0_i32_0 : i32, i32
  }
  func.func @transform_9(%arg0: i32) -> (i32, i32) {
    %c0_i32 = arith.constant 0 : i32
    %c0_i32_0 = arith.constant 0 : i32
    %c0_i32_1 = arith.constant 0 : i32
    return %c0_i32, %c0_i32_0 : i32, i32
  }
  func.func @transform_10(%arg0: i32) -> (i32, i32) {
    %c0_i32 = arith.constant 0 : i32
    %c0_i32_0 = arith.constant 0 : i32
    %c0_i32_1 = arith.constant 0 : i32
    return %c0_i32, %c0_i32_0 : i32, i32
  }
  func.func @transform_11(%arg0: i32) -> (i32, i32) {
    %c0_i32 = arith.constant 0 : i32
    %c0_i32_0 = arith.constant 0 : i32
    %c0_i32_1 = arith.constant 0 : i32
    return %c0_i32, %c0_i32_0 : i32, i32
  }
  func.func @transform_12(%arg0: i32) -> (i32, i32) {
    %c0_i32 = arith.constant 0 : i32
    %c0_i32_0 = arith.constant 0 : i32
    %c0_i32_1 = arith.constant 0 : i32
    return %c0_i32, %c0_i32_0 : i32, i32
  }
  func.func @transform_13(%arg0: i32) -> (i32, i32) {
    %c0_i32 = arith.constant 0 : i32
    %c0_i32_0 = arith.constant 0 : i32
    return %c0_i32, %arg0 : i32, i32
  }
}

</mosaic_0001>

<llo_original>
// kernel: dcnv2_forward.1
$region0: #{dcnv2_forward.1}
  #allocation0 [shape = 'u32[]', space=smem, size = 0x4, offset = 0x4, fixed_abs, tag = 'smem constant byte address 0x4 - core index']
  #allocation1 [shape = 'u32[144,128]{1,0:T(1,128)}', space=vmem, size = 0x12000, scoped, tag = 'internal scratch']
  #allocation2 [shape = 'f32[1,1]{1,0:T(1,128)S(1)}', space=vmem, size = 0x200, scoped, tag = 'scoped memory for dcnv2_forward.1']
  %s0 = inlined_call_operand.vmem [shape: bf16[26,256], index: 0, kind: input, shape index: {}]
  %s1 = inlined_call_operand.vmem [shape: bf16[8,26], index: 1, kind: input, shape index: {}]
  %s2 = inlined_call_operand.vmem [shape: bf16[26,8], index: 2, kind: input, shape index: {}]
  %s3 = inlined_call_operand.vmem [shape: f32[26,1], index: 3, kind: input, shape index: {}]
  %s4 = inlined_call_operand.vmem [shape: bf16[8,26], index: 4, kind: input, shape index: {}]
  %s5 = inlined_call_operand.vmem [shape: bf16[26,8], index: 5, kind: input, shape index: {}]
  %s6 = inlined_call_operand.vmem [shape: f32[26,1], index: 6, kind: input, shape index: {}]
  %s7 = inlined_call_operand.vmem [shape: bf16[32,26], index: 7, kind: input, shape index: {}]
  %s8 = inlined_call_operand.vmem [shape: f32[32,1], index: 8, kind: input, shape index: {}]
  %s9 = inlined_call_operand.vmem [shape: bf16[16,32], index: 9, kind: input, shape index: {}]
  %s10 = inlined_call_operand.vmem [shape: f32[16,1], index: 10, kind: input, shape index: {}]
  %s11 = inlined_call_operand.vmem [shape: f32[16,1], index: 11, kind: input, shape index: {}]
  %s12 = inlined_call_operand.<no memory space> [shape: f32[1,1], index: 12, kind: input, shape index: {}]
  %s13 = inlined_call_operand.hbm [shape: f32[1,256], index: 13, kind: output, shape index: {}]
  %s14 = sld [smem:[#allocation0]]
  $region126: #{dcnv2_forward.1} parent=0
    _
  %s16 = ssub.s32 1, %s14
  %s17 = scalar_select 0, %s16, %s14
  %v18 = vstv %s12
  %19 = vst [vmem:[#allocation2] sm:$0x1] %v18
  $region1: #{dcnv2_forward.1} parent=0
    #allocation3 [shape = 'u8[16384]{0}', space=vmem, size = 0x4000, scoped, tag = 'input window, operand 0']
    #allocation4 [shape = 'u8[1024]{0}', space=vmem, size = 0x400, scoped, tag = 'output window, operand 0']
    #allocation5 [shape = 's32[2]{0}', space=sflag, size = 0x8, scoped, tag = 'scoped memory for dcnv2_forward.1']
    %20 = vsyncpa [#allocation5], 0
    %s21 = scalar_lea.sflag [#allocation5], 1
    %22 = vsyncpa %s21, 0
    loop: start=0, step=1, limit=4
    $region2: #{dcnv2_forward.1} parent=1 // loop_pre_header
      _
    $region3: #{dcnv2_forward.1} parent=1 // loop_header
      %s24 = sphi 0, %s28
      %p25 = scmp.ge.s32.totalorder %s24, 4
      %s34 = sphi 0, %s36
      %s37 = sphi 0, %s34
      %s38 = sphi 0, %s37
      %s54 = sphi 0, %s38
      %s58 = sphi 0, %s58
      %s60 = sphi 0, %s58
      %s61 = sphi 0, %s60
      %s75 = sphi 0, %s61
      %s79 = sphi 0, %s79
      %s81 = sphi 0, %s79
      %s82 = sphi 0, %s81
      %s96 = sphi 0, %s82
      %s100 = sphi 0, %s100
      %s102 = sphi 0, %s100
      %s103 = sphi 0, %s102
      %s117 = sphi 0, %s103
      %s121 = sphi 0, %s121
      %s123 = sphi 0, %s121
      %s124 = sphi 0, %s123
      %s138 = sphi 0, %s124
      %s142 = sphi 0, %s142
      %s144 = sphi 0, %s142
      %s145 = sphi 0, %s144
      %s159 = sphi 0, %s145
      %s163 = sphi 0, %s163
      %s165 = sphi 0, %s163
      %s166 = sphi 0, %s165
      %s180 = sphi 0, %s166
      %s184 = sphi 0, %s184
      %s186 = sphi 0, %s184
      %s187 = sphi 0, %s186
      %s201 = sphi 0, %s187
      %s205 = sphi 0, %s205
      %s207 = sphi 0, %s205
      %s208 = sphi 0, %s207
      %s222 = sphi 0, %s208
      %s226 = sphi 0, %s226
      %s228 = sphi 0, %s226
      %s229 = sphi 0, %s228
      %s243 = sphi 0, %s229
      %s247 = sphi 0, %s247
      %s249 = sphi 0, %s247
      %s250 = sphi 0, %s249
      %s264 = sphi 0, %s250
      %s268 = sphi 0, %s268
      %s270 = sphi 0, %s268
      %s271 = sphi 0, %s270
      %s285 = sphi 0, %s271
      %s289 = sphi 0, %s289
      %s291 = sphi 0, %s289
      %s292 = sphi 0, %s291
      %s306 = sphi 0, %s292
      %s312 = sphi 0, %s314
      %s315 = sphi 0, %s312
      %s316 = sphi 0, %s315
      %s332 = sphi 0, %s316
    $region4: #{dcnv2_forward.1} parent=1 // loop_header_branch
      %27 = sbr.rel (%p25) target = $region8
    $region5: #{dcnv2_forward.1} parent=1 // loop_body
      %s29 = ssub.s32 %s24, 1
      %s30 = ssub.s32 %s24, 2
      %s31 = sadd.s32 %s24, 1
      %s32 = ssub.s32 %s24, %s31
      %p33 = scmp.eq.s32.totalorder %s32, 0
      %s35 = sadd.s32 %s34, 1
      %s36 = scalar_select %p33, %s34, %s35
      %p39 = pneg %p33
      %p40 = scmp.eq.s32.totalorder %s24, 1
      %p41 = por %p39, %p40
      %p42 = scmp.ne.s32.totalorder %s34, %s37
      %p43 = scmp.eq.s32.totalorder %s24, 0
      %p44 = por %p42, %p43
      %p45 = scmp.ne.s32.totalorder %s34, %s37
      %p46 = scmp.eq.s32.totalorder %s29, 1
      %p47 = por %p45, %p46
      %p48 = scmp.ne.s32.totalorder %s37, %s38
      %p49 = scmp.eq.s32.totalorder %s29, 0
      %p50 = por %p48, %p49
      %p51 = scmp.ne.s32.totalorder %s37, %s38
      %p52 = scmp.eq.s32.totalorder %s30, 1
      %p53 = por %p51, %p52
      %p55 = scmp.ne.s32.totalorder %s38, %s54
      %p56 = scmp.eq.s32.totalorder %s30, 0
      %p57 = por %p55, %p56
      %s59 = sadd.s32 %s58, 1
      %p62 = scmp.eq.s32.totalorder %s24, 1
      %p63 = scmp.ne.s32.totalorder %s58, %s60
      %p64 = scmp.eq.s32.totalorder %s24, 0
      %p65 = por %p63, %p64
      %p66 = scmp.ne.s32.totalorder %s58, %s60
      %p67 = scmp.eq.s32.totalorder %s29, 1
      %p68 = por %p66, %p67
      %p69 = scmp.ne.s32.totalorder %s60, %s61
      %p70 = scmp.eq.s32.totalorder %s29, 0
      %p71 = por %p69, %p70
      %p72 = scmp.ne.s32.totalorder %s60, %s61
      %p73 = scmp.eq.s32.totalorder %s30, 1
      %p74 = por %p72, %p73
      %p76 = scmp.ne.s32.totalorder %s61, %s75
      %p77 = scmp.eq.s32.totalorder %s30, 0
      %p78 = por %p76, %p77
      %s80 = sadd.s32 %s79, 1
      %p83 = scmp.eq.s32.totalorder %s24, 1
      %p84 = scmp.ne.s32.totalorder %s79, %s81
      %p85 = scmp.eq.s32.totalorder %s24, 0
      %p86 = por %p84, %p85
      %p87 = scmp.ne.s32.totalorder %s79, %s81
      %p88 = scmp.eq.s32.totalorder %s29, 1
      %p89 = por %p87, %p88
      %p90 = scmp.ne.s32.totalorder %s81, %s82
      %p91 = scmp.eq.s32.totalorder %s29, 0
      %p92 = por %p90, %p91
      %p93 = scmp.ne.s32.totalorder %s81, %s82
      %p94 = scmp.eq.s32.totalorder %s30, 1
      %p95 = por %p93, %p94
      %p97 = scmp.ne.s32.totalorder %s82, %s96
      %p98 = scmp.eq.s32.totalorder %s30, 0
      %p99 = por %p97, %p98
      %s101 = sadd.s32 %s100, 1
      %p104 = scmp.eq.s32.totalorder %s24, 1
      %p105 = scmp.ne.s32.totalorder %s100, %s102
      %p106 = scmp.eq.s32.totalorder %s24, 0
      %p107 = por %p105, %p106
      %p108 = scmp.ne.s32.totalorder %s100, %s102
      %p109 = scmp.eq.s32.totalorder %s29, 1
      %p110 = por %p108, %p109
      %p111 = scmp.ne.s32.totalorder %s102, %s103
      %p112 = scmp.eq.s32.totalorder %s29, 0
      %p113 = por %p111, %p112
      %p114 = scmp.ne.s32.totalorder %s102, %s103
      %p115 = scmp.eq.s32.totalorder %s30, 1
      %p116 = por %p114, %p115
      %p118 = scmp.ne.s32.totalorder %s103, %s117
      %p119 = scmp.eq.s32.totalorder %s30, 0
      %p120 = por %p118, %p119
      %s122 = sadd.s32 %s121, 1
      %p125 = scmp.eq.s32.totalorder %s24, 1
      %p126 = scmp.ne.s32.totalorder %s121, %s123
      %p127 = scmp.eq.s32.totalorder %s24, 0
      %p128 = por %p126, %p127
      %p129 = scmp.ne.s32.totalorder %s121, %s123
      %p130 = scmp.eq.s32.totalorder %s29, 1
      %p131 = por %p129, %p130
      %p132 = scmp.ne.s32.totalorder %s123, %s124
      %p133 = scmp.eq.s32.totalorder %s29, 0
      %p134 = por %p132, %p133
      %p135 = scmp.ne.s32.totalorder %s123, %s124
      %p136 = scmp.eq.s32.totalorder %s30, 1
      %p137 = por %p135, %p136
      %p139 = scmp.ne.s32.totalorder %s124, %s138
      %p140 = scmp.eq.s32.totalorder %s30, 0
      %p141 = por %p139, %p140
      %s143 = sadd.s32 %s142, 1
      %p146 = scmp.eq.s32.totalorder %s24, 1
      %p147 = scmp.ne.s32.totalorder %s142, %s144
      %p148 = scmp.eq.s32.totalorder %s24, 0
      %p149 = por %p147, %p148
      %p150 = scmp.ne.s32.totalorder %s142, %s144
      %p151 = scmp.eq.s32.totalorder %s29, 1
      %p152 = por %p150, %p151
      %p153 = scmp.ne.s32.totalorder %s144, %s145
      %p154 = scmp.eq.s32.totalorder %s29, 0
      %p155 = por %p153, %p154
      %p156 = scmp.ne.s32.totalorder %s144, %s145
      %p157 = scmp.eq.s32.totalorder %s30, 1
      %p158 = por %p156, %p157
      %p160 = scmp.ne.s32.totalorder %s145, %s159
      %p161 = scmp.eq.s32.totalorder %s30, 0
      %p162 = por %p160, %p161
      %s164 = sadd.s32 %s163, 1
      %p167 = scmp.eq.s32.totalorder %s24, 1
      %p168 = scmp.ne.s32.totalorder %s163, %s165
      %p169 = scmp.eq.s32.totalorder %s24, 0
      %p170 = por %p168, %p169
      %p171 = scmp.ne.s32.totalorder %s163, %s165
      %p172 = scmp.eq.s32.totalorder %s29, 1
      %p173 = por %p171, %p172
      %p174 = scmp.ne.s32.totalorder %s165, %s166
      %p175 = scmp.eq.s32.totalorder %s29, 0
      %p176 = por %p174, %p175
      %p177 = scmp.ne.s32.totalorder %s165, %s166
      %p178 = scmp.eq.s32.totalorder %s30, 1
      %p179 = por %p177, %p178
      %p181 = scmp.ne.s32.totalorder %s166, %s180
      %p182 = scmp.eq.s32.totalorder %s30, 0
      %p183 = por %p181, %p182
      %s185 = sadd.s32 %s184, 1
      %p188 = scmp.eq.s32.totalorder %s24, 1
      %p189 = scmp.ne.s32.totalorder %s184, %s186
      %p190 = scmp.eq.s32.totalorder %s24, 0
      %p191 = por %p189, %p190
      %p192 = scmp.ne.s32.totalorder %s184, %s186
      %p193 = scmp.eq.s32.totalorder %s29, 1
      %p194 = por %p192, %p193
      %p195 = scmp.ne.s32.totalorder %s186, %s187
      %p196 = scmp.eq.s32.totalorder %s29, 0
      %p197 = por %p195, %p196
      %p198 = scmp.ne.s32.totalorder %s186, %s187
      %p199 = scmp.eq.s32.totalorder %s30, 1
      %p200 = por %p198, %p199
      %p202 = scmp.ne.s32.totalorder %s187, %s201
      %p203 = scmp.eq.s32.totalorder %s30, 0
      %p204 = por %p202, %p203
      %s206 = sadd.s32 %s205, 1
      %p209 = scmp.eq.s32.totalorder %s24, 1
      %p210 = scmp.ne.s32.totalorder %s205, %s207
      %p211 = scmp.eq.s32.totalorder %s24, 0
      %p212 = por %p210, %p211
      %p213 = scmp.ne.s32.totalorder %s205, %s207
      %p214 = scmp.eq.s32.totalorder %s29, 1
      %p215 = por %p213, %p214
      %p216 = scmp.ne.s32.totalorder %s207, %s208
      %p217 = scmp.eq.s32.totalorder %s29, 0
      %p218 = por %p216, %p217
      %p219 = scmp.ne.s32.totalorder %s207, %s208
      %p220 = scmp.eq.s32.totalorder %s30, 1
      %p221 = por %p219, %p220
      %p223 = scmp.ne.s32.totalorder %s208, %s222
      %p224 = scmp.eq.s32.totalorder %s30, 0
      %p225 = por %p223, %p224
      %s227 = sadd.s32 %s226, 1
      %p230 = scmp.eq.s32.totalorder %s24, 1
      %p231 = scmp.ne.s32.totalorder %s226, %s228
      %p232 = scmp.eq.s32.totalorder %s24, 0
      %p233 = por %p231, %p232
      %p234 = scmp.ne.s32.totalorder %s226, %s228
      %p235 = scmp.eq.s32.totalorder %s29, 1
      %p236 = por %p234, %p235
      %p237 = scmp.ne.s32.totalorder %s228, %s229
      %p238 = scmp.eq.s32.totalorder %s29, 0
      %p239 = por %p237, %p238
      %p240 = scmp.ne.s32.totalorder %s228, %s229
      %p241 = scmp.eq.s32.totalorder %s30, 1
      %p242 = por %p240, %p241
      %p244 = scmp.ne.s32.totalorder %s229, %s243
      %p245 = scmp.eq.s32.totalorder %s30, 0
      %p246 = por %p244, %p245
      %s248 = sadd.s32 %s247, 1
      %p251 = scmp.eq.s32.totalorder %s24, 1
      %p252 = scmp.ne.s32.totalorder %s247, %s249
      %p253 = scmp.eq.s32.totalorder %s24, 0
      %p254 = por %p252, %p253
      %p255 = scmp.ne.s32.totalorder %s247, %s249
      %p256 = scmp.eq.s32.totalorder %s29, 1
      %p257 = por %p255, %p256
      %p258 = scmp.ne.s32.totalorder %s249, %s250
      %p259 = scmp.eq.s32.totalorder %s29, 0
      %p260 = por %p258, %p259
      %p261 = scmp.ne.s32.totalorder %s249, %s250
      %p262 = scmp.eq.s32.totalorder %s30, 1
      %p263 = por %p261, %p262
      %p265 = scmp.ne.s32.totalorder %s250, %s264
      %p266 = scmp.eq.s32.totalorder %s30, 0
      %p267 = por %p265, %p266
      %s269 = sadd.s32 %s268, 1
      %p272 = scmp.eq.s32.totalorder %s24, 1
      %p273 = scmp.ne.s32.totalorder %s268, %s270
      %p274 = scmp.eq.s32.totalorder %s24, 0
      %p275 = por %p273, %p274
      %p276 = scmp.ne.s32.totalorder %s268, %s270
      %p277 = scmp.eq.s32.totalorder %s29, 1
      %p278 = por %p276, %p277
      %p279 = scmp.ne.s32.totalorder %s270, %s271
      %p280 = scmp.eq.s32.totalorder %s29, 0
      %p281 = por %p279, %p280
      %p282 = scmp.ne.s32.totalorder %s270, %s271
      %p283 = scmp.eq.s32.totalorder %s30, 1
      %p284 = por %p282, %p283
      %p286 = scmp.ne.s32.totalorder %s271, %s285
      %p287 = scmp.eq.s32.totalorder %s30, 0
      %p288 = por %p286, %p287
      %s290 = sadd.s32 %s289, 1
      %p293 = scmp.eq.s32.totalorder %s24, 1
      %p294 = scmp.ne.s32.totalorder %s289, %s291
      %p295 = scmp.eq.s32.totalorder %s24, 0
      %p296 = por %p294, %p295
      %p297 = scmp.ne.s32.totalorder %s289, %s291
      %p298 = scmp.eq.s32.totalorder %s29, 1
      %p299 = por %p297, %p298
      %p300 = scmp.ne.s32.totalorder %s291, %s292
      %p301 = scmp.eq.s32.totalorder %s29, 0
      %p302 = por %p300, %p301
      %p303 = scmp.ne.s32.totalorder %s291, %s292
      %p304 = scmp.eq.s32.totalorder %s30, 1
      %p305 = por %p303, %p304
      %p307 = scmp.ne.s32.totalorder %s292, %s306
      %p308 = scmp.eq.s32.totalorder %s30, 0
      %p309 = por %p307, %p308
      %s310 = ssub.s32 %s24, %s31
      %p311 = scmp.eq.s32.totalorder %s310, 0
      %s313 = sadd.s32 %s312, 1
      %s314 = scalar_select %p311, %s312, %s313
      %p317 = pneg %p311
      %p318 = scmp.eq.s32.totalorder %s24, 1
      %p319 = por %p317, %p318
      %p320 = scmp.ne.s32.totalorder %s312, %s315
      %p321 = scmp.eq.s32.totalorder %s24, 0
      %p322 = por %p320, %p321
      %p323 = scmp.ne.s32.totalorder %s312, %s315
      %p324 = scmp.eq.s32.totalorder %s29, 1
      %p325 = por %p323, %p324
      %p326 = scmp.ne.s32.totalorder %s315, %s316
      %p327 = scmp.eq.s32.totalorder %s29, 0
      %p328 = por %p326, %p327
      %p329 = scmp.ne.s32.totalorder %s315, %s316
      %p330 = scmp.eq.s32.totalorder %s30, 1
      %p331 = por %p329, %p330
      %p333 = scmp.ne.s32.totalorder %s316, %s332
      %p334 = scmp.eq.s32.totalorder %s30, 0
      %p335 = por %p333, %p334
      %p336 = scmp.le.s32.totalorder 1, %s24
      %p337 = scmp.lt.s32.totalorder %s24, 3
      %p338 = pnand %p336, %p337
      %p339 = pneg %p338
      // Predicated region
      $region9: #{dcnv2_forward.1} parent=5 // pred_check
        _
      $region10: #{dcnv2_forward.1} parent=5 // pred_check_branch
        %341 = sbr.rel (%p338) target = $region12
      $region11: #{dcnv2_forward.1} parent=5 // pred_region
        %s342 = ssub.s32 %s24, 1
        // Predicated region
        $region13: #{dcnv2_forward.1} parent=11 // pred_check
          %p343 = pneg %p71
        $region14: #{dcnv2_forward.1} parent=11 // pred_check_branch
          %345 = sbr.rel (%p343) target = $region16
        $region15: #{dcnv2_forward.1} parent=11 // pred_region
          _
        $region16: #{dcnv2_forward.1} parent=11 // pred_fallthru
          _
        // Predicated region
        $region17: #{dcnv2_forward.1} parent=11 // pred_check
          %p346 = pneg %p92
        $region18: #{dcnv2_forward.1} parent=11 // pred_check_branch
          %348 = sbr.rel (%p346) target = $region20
        $region19: #{dcnv2_forward.1} parent=11 // pred_region
          _
        $region20: #{dcnv2_forward.1} parent=11 // pred_fallthru
          _
        // Predicated region
        $region21: #{dcnv2_forward.1} parent=11 // pred_check
          %p349 = pneg %p113
        $region22: #{dcnv2_forward.1} parent=11 // pred_check_branch
          %351 = sbr.rel (%p349) target = $region24
        $region23: #{dcnv2_forward.1} parent=11 // pred_region
          _
        $region24: #{dcnv2_forward.1} parent=11 // pred_fallthru
          _
        // Predicated region
        $region25: #{dcnv2_forward.1} parent=11 // pred_check
          %p352 = pneg %p134
        $region26: #{dcnv2_forward.1} parent=11 // pred_check_branch
          %354 = sbr.rel (%p352) target = $region28
        $region27: #{dcnv2_forward.1} parent=11 // pred_region
          _
        $region28: #{dcnv2_forward.1} parent=11 // pred_fallthru
          _
        // Predicated region
        $region29: #{dcnv2_forward.1} parent=11 // pred_check
          %p355 = pneg %p155
        $region30: #{dcnv2_forward.1} parent=11 // pred_check_branch
          %357 = sbr.rel (%p355) target = $region32
        $region31: #{dcnv2_forward.1} parent=11 // pred_region
          _
        $region32: #{dcnv2_forward.1} parent=11 // pred_fallthru
          _
        // Predicated region
        $region33: #{dcnv2_forward.1} parent=11 // pred_check
          %p358 = pneg %p176
        $region34: #{dcnv2_forward.1} parent=11 // pred_check_branch
          %360 = sbr.rel (%p358) target = $region36
        $region35: #{dcnv2_forward.1} parent=11 // pred_region
          _
        $region36: #{dcnv2_forward.1} parent=11 // pred_fallthru
          _
        // Predicated region
        $region37: #{dcnv2_forward.1} parent=11 // pred_check
          %p361 = pneg %p197
        $region38: #{dcnv2_forward.1} parent=11 // pred_check_branch
          %363 = sbr.rel (%p361) target = $region40
        $region39: #{dcnv2_forward.1} parent=11 // pred_region
          _
        $region40: #{dcnv2_forward.1} parent=11 // pred_fallthru
          _
        // Predicated region
        $region41: #{dcnv2_forward.1} parent=11 // pred_check
          %p364 = pneg %p218
        $region42: #{dcnv2_forward.1} parent=11 // pred_check_branch
          %366 = sbr.rel (%p364) target = $region44
        $region43: #{dcnv2_forward.1} parent=11 // pred_region
          _
        $region44: #{dcnv2_forward.1} parent=11 // pred_fallthru
          _
        // Predicated region
        $region45: #{dcnv2_forward.1} parent=11 // pred_check
          %p367 = pneg %p239
        $region46: #{dcnv2_forward.1} parent=11 // pred_check_branch
          %369 = sbr.rel (%p367) target = $region48
        $region47: #{dcnv2_forward.1} parent=11 // pred_region
          _
        $region48: #{dcnv2_forward.1} parent=11 // pred_fallthru
          _
        // Predicated region
        $region49: #{dcnv2_forward.1} parent=11 // pred_check
          %p370 = pneg %p260
        $region50: #{dcnv2_forward.1} parent=11 // pred_check_branch
          %372 = sbr.rel (%p370) target = $region52
        $region51: #{dcnv2_forward.1} parent=11 // pred_region
          _
        $region52: #{dcnv2_forward.1} parent=11 // pred_fallthru
          _
        // Predicated region
        $region53: #{dcnv2_forward.1} parent=11 // pred_check
          %p373 = pneg %p281
        $region54: #{dcnv2_forward.1} parent=11 // pred_check_branch
          %375 = sbr.rel (%p373) target = $region56
        $region55: #{dcnv2_forward.1} parent=11 // pred_region
          _
        $region56: #{dcnv2_forward.1} parent=11 // pred_fallthru
          _
        // Predicated region
        $region57: #{dcnv2_forward.1} parent=11 // pred_check
          %p376 = pneg %p302
        $region58: #{dcnv2_forward.1} parent=11 // pred_check_branch
          %378 = sbr.rel (%p376) target = $region60
        $region59: #{dcnv2_forward.1} parent=11 // pred_region
          _
        $region60: #{dcnv2_forward.1} parent=11 // pred_fallthru
          _
      $region12: #{dcnv2_forward.1} parent=5 // pred_fallthru
        _
      %p379 = scmp.lt.s32.totalorder %s24, 2
      // Predicated region
      $region61: #{dcnv2_forward.1} parent=5 // pred_check
        %p380 = pneg %p379
      $region62: #{dcnv2_forward.1} parent=5 // pred_check_branch
        %382 = sbr.rel (%p380) target = $region64
      $region63: #{dcnv2_forward.1} parent=5 // pred_region
        // Predicated region
        $region65: #{dcnv2_forward.1} parent=63 // pred_check
          %p383 = pneg %p44
        $region66: #{dcnv2_forward.1} parent=63 // pred_check_branch
          %385 = sbr.rel (%p383) target = $region68
        $region67: #{dcnv2_forward.1} parent=63 // pred_region
          %s386 = sand.u32 %s34, 1
          %s387 = sand.u32 %s34, 1
          %s388 = smul.addr %s387, 16
          %s389 = scalar_lea.vmem [#allocation3], %s388
          %s390 = smul.addr %s24, 4
          %s391 = scalar_lea.vmem %s0, %s390
          // Predicated region
          $region69: #{dcnv2_forward.1} parent=67 // pred_check
            _
          $region70: #{dcnv2_forward.1} parent=67 // pred_check_branch
            %393 = sbr.rel (0) target = $region72
          $region71: #{dcnv2_forward.1} parent=67 // pred_region
            // Predicated region
            $region73: #{dcnv2_forward.1} parent=71 // pred_check
              _
            $region74: #{dcnv2_forward.1} parent=71 // pred_check_branch
              %395 = sbr.rel target = $region76
            $region75: #{dcnv2_forward.1} parent=71 // pred_region
              // Predicated region
              $region88: #{dcnv2_forward.1} parent=75 // pred_check
                _
              $region89: #{dcnv2_forward.1} parent=75 // pred_check_branch
                %417 = sbr.rel (0) target = $region91
              $region90: #{dcnv2_forward.1} parent=75 // pred_region
                loop: start=0, step=1, limit=1
                $region92: #{dcnv2_forward.1} parent=90 // loop_pre_header
                  _
                $region93: #{dcnv2_forward.1} parent=90 // loop_header
                  %s419 = sphi 0, %s423
                  %p420 = scmp.ge.s32.totalorder %s419, 1
                  %s424 = sphi %s391, %s391
                  %s425 = sphi %s389, %s389
                $region94: #{dcnv2_forward.1} parent=90 // loop_header_branch
                  %422 = sbr.rel (%p420) target = $region98
                $region95: #{dcnv2_forward.1} parent=90 // loop_body
                  _
                $region96: #{dcnv2_forward.1} parent=90 // loop_footer
                  %s423 = sadd.s32 1, %s419
                $region97: #{dcnv2_forward.1} parent=90 // loop_footer_branch
                  %418 = sbr.rel target = $region93
                $region98: #{dcnv2_forward.1} parent=90 // loop_exit
                  _
                %s427 = ssub.s32 16, 1
                loop: start=0, step=1, limit=1
                $region99: #{dcnv2_forward.1} parent=90 // loop_pre_header
                  _
                $region100: #{dcnv2_forward.1} parent=90 // loop_header
                  %s429 = sphi 0, %s433
                  %p430 = scmp.ge.s32.totalorder %s429, 1
                  %s434 = sphi %s391, %s391
                  %s435 = sphi %s389, %s389
                $region101: #{dcnv2_forward.1} parent=90 // loop_header_branch
                  %432 = sbr.rel (%p430) target = $region105
                $region102: #{dcnv2_forward.1} parent=90 // loop_body
                  %v436 = vld [vmem:[%s434] sm:%s427]
                  %437 = vst [vmem:[%s435] sm:%s427] %v436
                  %v438 = vld [vmem:[%s434 + $0x8] sm:%s427]
                  %439 = vst [vmem:[%s435 + $0x4] sm:%s427] %v438
                  %v440 = vld [vmem:[%s434 + $0x10] sm:%s427]
                  %441 = vst [vmem:[%s435 + $0x8] sm:%s427] %v440
                  %v442 = vld [vmem:[%s434 + $0x18] sm:%s427]
                  %443 = vst [vmem:[%s435 + $0xc] sm:%s427] %v442
                $region103: #{dcnv2_forward.1} parent=90 // loop_footer
                  %s433 = sadd.s32 1, %s429
                $region104: #{dcnv2_forward.1} parent=90 // loop_footer_branch
                  %428 = sbr.rel target = $region100
                $region105: #{dcnv2_forward.1} parent=90 // loop_exit
                  _
              $region91: #{dcnv2_forward.1} parent=75 // pred_fallthru
                _
            $region76: #{dcnv2_forward.1} parent=71 // pred_fallthru
              _
            // Predicated region
            $region77: #{dcnv2_forward.1} parent=71 // pred_check
              _
            $region78: #{dcnv2_forward.1} parent=71 // pred_check_branch
              %397 = sbr.rel (0) target = $region80
            $region79: #{dcnv2_forward.1} parent=71 // pred_region
              %s399 = ssub.s32 16, 1
              loop: start=0, step=1, limit=1
              $region81: #{dcnv2_forward.1} parent=79 // loop_pre_header
                _
              $region82: #{dcnv2_forward.1} parent=79 // loop_header
                %s401 = sphi 0, %s405
                %p402 = scmp.ge.s32.totalorder %s401, 1
                %s406 = sphi %s391, %s391
                %s407 = sphi %s389, %s389
              $region83: #{dcnv2_forward.1} parent=79 // loop_header_branch
                %404 = sbr.rel (%p402) target = $region87
              $region84: #{dcnv2_forward.1} parent=79 // loop_body
                %v408 = vld [vmem:[%s406] sm:%s399]
                %409 = vst [vmem:[%s407] sm:%s399] %v408
                %v410 = vld [vmem:[%s406 + $0x8] sm:%s399]
                %411 = vst [vmem:[%s407 + $0x4] sm:%s399] %v410
                %v412 = vld [vmem:[%s406 + $0x10] sm:%s399]
                %413 = vst [vmem:[%s407 + $0x8] sm:%s399] %v412
                %v414 = vld [vmem:[%s406 + $0x18] sm:%s399]
                %415 = vst [vmem:[%s407 + $0xc] sm:%s399] %v414
              $region85: #{dcnv2_forward.1} parent=79 // loop_footer
                %s405 = sadd.s32 1, %s401
              $region86: #{dcnv2_forward.1} parent=79 // loop_footer_branch
                %400 = sbr.rel target = $region82
              $region87: #{dcnv2_forward.1} parent=79 // loop_exit
                _
            $region80: #{dcnv2_forward.1} parent=71 // pred_fallthru
              _
          $region72: #{dcnv2_forward.1} parent=67 // pred_fallthru
            _
          %444 = vnop
        $region68: #{dcnv2_forward.1} parent=63 // pred_fallthru
          _
      $region64: #{dcnv2_forward.1} parent=5 // pred_fallthru
        _
      %p445 = scmp.le.s32.totalorder 1, %s24
      %p446 = scmp.lt.s32.totalorder %s24, 3
      %p447 = pnand %p445, %p446
      %p448 = pneg %p447
      // Predicated region
      $region106: #{dcnv2_forward.1} parent=5 // pred_check
        _
      $region107: #{dcnv2_forward.1} parent=5 // pred_check_branch
        %450 = sbr.rel (%p447) target = $region109
      $region108: #{dcnv2_forward.1} parent=5 // pred_region
        %s451 = ssub.s32 %s24, 1
        %s452 = sand.u32 %s37, 1
        %s453 = sand.u32 %s37, 1
        %s454 = smul.addr %s453, 16
        %s455 = scalar_lea.vmem [#allocation3], %s454
        // Predicated region
        $region110: #{dcnv2_forward.1} parent=108 // pred_check
          %p456 = pneg %p50
        $region111: #{dcnv2_forward.1} parent=108 // pred_check_branch
          %458 = sbr.rel (%p456) target = $region113
        $region112: #{dcnv2_forward.1} parent=108 // pred_region
          _
        $region113: #{dcnv2_forward.1} parent=108 // pred_fallthru
          _
        %s459 = sand.u32 %s37, 1
        %s460 = sand.u32 %s37, 1
        %s461 = smul.addr %s460, 16
        %s462 = scalar_lea.vmem [#allocation3], %s461
        %p463 = pneg %p50
        %p464 = pneg %p47
        %p465 = pneg %p71
        %p466 = pneg %p68
        %p467 = pneg %p92
        %p468 = pneg %p89
        %p469 = pneg %p113
        %p470 = pneg %p110
        %p471 = pneg %p134
        %p472 = pneg %p131
        %p473 = pneg %p155
        %p474 = pneg %p152
        %p475 = pneg %p176
        %p476 = pneg %p173
        %p477 = pneg %p197
        %p478 = pneg %p194
        %p479 = pneg %p218
        %p480 = pneg %p215
        %p481 = pneg %p239
        %p482 = pneg %p236
        %p483 = pneg %p260
        %p484 = pneg %p257
        %p485 = pneg %p281
        %p486 = pneg %p278
        %p487 = pneg %p302
        %p488 = pneg %p299
        %p489 = pneg %p328
        %p490 = pneg %p325
        %s491 = sand.u32 %s315, 1
        %s492 = scalar_lea.sflag [#allocation5], %s491
        %s493 = sand.u32 %s315, 1
        %s494 = scalar_lea.vmem [#allocation4], %s493
        %v496 = vld [vmem:[%s455] sm:$0xf]
        %v497 = vld [vmem:[%s455 + $0x4] sm:$0xf]
        %v498 = vld [vmem:[%s455 + $0x8] sm:$0xf]
        %v499 = vld [vmem:[%s455 + $0xc] sm:$0x1]
        %v500 = vunpack.c.l.bf16 %v496
        %v501 = vunpack.c.l.bf16 %v497
        %v502 = vunpack.c.l.bf16 %v498
        %v503 = vunpack.c.l.bf16 %v499
        %v504 = vld [vmem:[%s1] sm:$0xf]
        %v509 = vunpack.c.l.b16 %v496
        %v510 = vunpack.c.l.b16 %v497
        %v511 = vunpack.c.l.b16 %v498
        %v512 = vunpack.c.l.b16 %v499
        %v513 = vpack.c.b16 %v510, %v509
        %v514 = vpack.c.b16 %v512, %v511
        %vm516 = vcmask 211968
        %v518 = vsel %vm516, %v504, 0
        %vm520 = vcmask 1044480
        %v522 = vsel %vm520, %v514, 0
        %524 = vmatprep.subr.bf16.mxu0 0
        %525 = vmatpush1.bf16.msra.mxu0 0
        %526 = vmatprep.subr.bf16.mxu0 0
        %527 = vmatpush1.bf16.msra.mxu0 0
        %528 = vmatprep.subr.bf16.mxu0 0
        %529 = vmatpush1.bf16.msra.mxu0 0
        %530 = vmatprep.subr.bf16.mxu0 0
        %531 = vmatpush1.bf16.msra.mxu0 0
        %532 = vmatprep.subr.bf16.mxu0 0
        %533 = vmatpush1.bf16.msra.mxu0 0
        %534 = vmatprep.subr.bf16.mxu0 0
        %535 = vmatpush1.bf16.msra.mxu0 0
        %536 = vmatprep.subr.bf16.mxu0 0
        %537 = vmatpush1.bf16.msra.mxu0 %v522
        %538 = vmatprep.subr.bf16.mxu0 0
        %539 = vmatpush1.bf16.msra.mxu0 %v513
        %540 = vmatprep.subr.bf16.mxu0 0
        %541 = vmatpush2.bf16.msra.mxu0 0
        %542 = vmatprep.subr.bf16.mxu0 0
        %543 = vmatpush2.bf16.msra.mxu0 0
        %544 = vmatprep.subr.bf16.mxu0 0
        %545 = vmatpush2.bf16.msra.mxu0 0
        %546 = vmatprep.subr.bf16.mxu0 0
        %547 = vmatpush2.bf16.msra.mxu0 0
        %548 = vmatprep.subr.bf16.mxu0 0
        %549 = vmatpush2.bf16.msra.mxu0 0
        %550 = vmatprep.subr.bf16.mxu0 0
        %551 = vmatpush2.bf16.msra.mxu0 0
        %552 = vmatprep.subr.bf16.mxu0 0
        %553 = vmatpush2.bf16.msra.mxu0 0
        %554 = vmatprep.subr.bf16.mxu0 0
        %555 = vmatpush2.bf16.msra.mxu0 0
        %556 = vmatprep.mubr.bf16.mxu0 0
        %557 = vmatmul.mubr.bf16.gmra.mxu0 %v518
        %v558 = vpop.f32.mrf.mxu0
        %v559 = vadd.f32 0.0, %v558
        %v560 = vpop.f32.mrf.mxu0
        %v561 = vpop.f32.mrf.mxu0
        %v562 = vpop.f32.mrf.mxu0
        %563 = vdwg.mxu0
        %v564 = vld [vmem:[%s2] sm:$0xf]
        %v565 = vld [vmem:[%s2 + $0x4] sm:$0xf]
        %v566 = vld [vmem:[%s2 + $0x8] sm:$0xf]
        %v567 = vld [vmem:[%s2 + $0xc] sm:$0x1]
        %v568 = vpack.c.bf16 %v559, %v559
        %v573 = vunpack.c.l.b16 %v564
        %v574 = vunpack.c.l.b16 %v565
        %v575 = vunpack.c.l.b16 %v566
        %v576 = vunpack.c.l.b16 %v567
        %v577 = vpack.c.b16 %v574, %v573
        %v578 = vpack.c.b16 %v576, %v575
        %vm579 = vcmask 64512
        %v581 = vsel %vm579, %v577, 0
        %v584 = vsel %vm579, %v578, 0
        %vm586 = vcmask 1043456
        %v588 = vsel %vm586, %v568, 0
        %590 = vmatprep.subr.bf16.mxu0 0
        %591 = vmatpush1.bf16.msra.mxu0 0
        %592 = vmatprep.subr.bf16.mxu0 0
        %593 = vmatpush1.bf16.msra.mxu0 0
        %594 = vmatprep.subr.bf16.mxu0 0
        %595 = vmatpush1.bf16.msra.mxu0 0
        %596 = vmatprep.subr.bf16.mxu0 0
        %597 = vmatpush1.bf16.msra.mxu0 0
        %598 = vmatprep.subr.bf16.mxu0 0
        %599 = vmatpush1.bf16.msra.mxu0 0
        %600 = vmatprep.subr.bf16.mxu0 0
        %601 = vmatpush1.bf16.msra.mxu0 0
        %602 = vmatprep.subr.bf16.mxu0 0
        %603 = vmatpush1.bf16.msra.mxu0 0
        %604 = vmatprep.subr.bf16.mxu0 0
        %605 = vmatpush1.bf16.msra.mxu0 %v588
        %606 = vmatprep.subr.bf16.mxu0 0
        %607 = vmatpush2.bf16.msra.mxu0 0
        %608 = vmatprep.subr.bf16.mxu0 0
        %609 = vmatpush2.bf16.msra.mxu0 0
        %610 = vmatprep.subr.bf16.mxu0 0
        %611 = vmatpush2.bf16.msra.mxu0 0
        %612 = vmatprep.subr.bf16.mxu0 0
        %613 = vmatpush2.bf16.msra.mxu0 0
        %614 = vmatprep.subr.bf16.mxu0 0
        %615 = vmatpush2.bf16.msra.mxu0 0
        %616 = vmatprep.subr.bf16.mxu0 0
        %617 = vmatpush2.bf16.msra.mxu0 0
        %618 = vmatprep.subr.bf16.mxu0 0
        %619 = vmatpush2.bf16.msra.mxu0 0
        %620 = vmatprep.subr.bf16.mxu0 0
        %621 = vmatpush2.bf16.msra.mxu0 0
        %622 = vmatprep.mubr.bf16.mxu0 0
        %623 = vmatmul.mubr.bf16.gmra.mxu0 %v581
        %v624 = vpop.f32.mrf.mxu0
        %v625 = vadd.f32 0.0, %v624
        %v626 = vpop.f32.mrf.mxu0
        %v627 = vpop.f32.mrf.mxu0
        %v628 = vadd.f32 0.0, %v627
        %v629 = vpop.f32.mrf.mxu0
        %630 = vmatprep.mubr.bf16.mxu0 0
        %631 = vmatmul.mubr.bf16.gmra.mxu0 %v584
        %v632 = vpop.f32.mrf.mxu0
        %v633 = vadd.f32 0.0, %v632
        %v634 = vpop.f32.mrf.mxu0
        %v635 = vpop.f32.mrf.mxu0
        %v636 = vadd.f32 0.0, %v635
        %v637 = vpop.f32.mrf.mxu0
        %638 = vdwg.mxu0
        %v639 = vmul.f32 %v500, %v625
        %v640 = vmul.f32 %v501, %v628
        %v641 = vmul.f32 %v502, %v633
        %v642 = vmul.f32 %v503, %v636
        %v643 = vadd.f32 %v639, %v500
        %v644 = vadd.f32 %v640, %v501
        %v645 = vadd.f32 %v641, %v502
        %v646 = vadd.f32 %v642, %v503
        %v647 = vld [vmem:[%s3] sm:$0xff]
        %v648 = vld [vmem:[%s3 + $0x8] sm:$0xff]
        %v649 = vld [vmem:[%s3 + $0x10] sm:$0xff]
        %v650 = vld [vmem:[%s3 + $0x18] sm:$0x3]
        %652 = vset.pattern.permute.xlu0 0
        %653 = vperm.xlu0 %652, %v647
        %v654 = vpop.permute.xlu0 %653
        %657 = vset.pattern.permute.xlu0 0
        %658 = vperm.xlu0 %657, %v648
        %v659 = vpop.permute.xlu0 %658
        %662 = vset.pattern.permute.xlu0 0
        %663 = vperm.xlu0 %662, %v649
        %v664 = vpop.permute.xlu0 %663
        %667 = vset.pattern.permute.xlu0 0
        %668 = vperm.xlu0 %667, %v650
        %v669 = vpop.permute.xlu0 %668
        %v671 = vadd.f32 %v643, %v654
        %v672 = vadd.f32 %v644, %v659
        %v673 = vadd.f32 %v645, %v664
        %v674 = vadd.f32 %v646, %v669
        %v675 = vpack.c.bf16 %v672, %v671
        %v676 = vpack.c.bf16 %v674, %v673
        %v677 = vld [vmem:[%s4] sm:$0xf]
        %v679 = vsel %vm516, %v677, 0
        %v682 = vsel %vm520, %v676, 0
        %684 = vmatprep.subr.bf16.mxu0 0
        %685 = vmatpush1.bf16.msra.mxu0 0
        %686 = vmatprep.subr.bf16.mxu0 0
        %687 = vmatpush1.bf16.msra.mxu0 0
        %688 = vmatprep.subr.bf16.mxu0 0
        %689 = vmatpush1.bf16.msra.mxu0 0
        %690 = vmatprep.subr.bf16.mxu0 0
        %691 = vmatpush1.bf16.msra.mxu0 0
        %692 = vmatprep.subr.bf16.mxu0 0
        %693 = vmatpush1.bf16.msra.mxu0 0
        %694 = vmatprep.subr.bf16.mxu0 0
        %695 = vmatpush1.bf16.msra.mxu0 0
        %696 = vmatprep.subr.bf16.mxu0 0
        %697 = vmatpush1.bf16.msra.mxu0 %v682
        %698 = vmatprep.subr.bf16.mxu0 0
        %699 = vmatpush1.bf16.msra.mxu0 %v675
        %700 = vmatprep.subr.bf16.mxu0 0
        %701 = vmatpush2.bf16.msra.mxu0 0
        %702 = vmatprep.subr.bf16.mxu0 0
        %703 = vmatpush2.bf16.msra.mxu0 0
        %704 = vmatprep.subr.bf16.mxu0 0
        %705 = vmatpush2.bf16.msra.mxu0 0
        %706 = vmatprep.subr.bf16.mxu0 0
        %707 = vmatpush2.bf16.msra.mxu0 0
        %708 = vmatprep.subr.bf16.mxu0 0
        %709 = vmatpush2.bf16.msra.mxu0 0
        %710 = vmatprep.subr.bf16.mxu0 0
        %711 = vmatpush2.bf16.msra.mxu0 0
        %712 = vmatprep.subr.bf16.mxu0 0
        %713 = vmatpush2.bf16.msra.mxu0 0
        %714 = vmatprep.subr.bf16.mxu0 0
        %715 = vmatpush2.bf16.msra.mxu0 0
        %716 = vmatprep.mubr.bf16.mxu0 0
        %717 = vmatmul.mubr.bf16.gmra.mxu0 %v679
        %v718 = vpop.f32.mrf.mxu0
        %v719 = vadd.f32 0.0, %v718
        %v720 = vpop.f32.mrf.mxu0
        %v721 = vpop.f32.mrf.mxu0
        %v722 = vpop.f32.mrf.mxu0
        %723 = vdwg.mxu0
        %v724 = vld [vmem:[%s5] sm:$0xf]
        %v725 = vld [vmem:[%s5 + $0x4] sm:$0xf]
        %v726 = vld [vmem:[%s5 + $0x8] sm:$0xf]
        %v727 = vld [vmem:[%s5 + $0xc] sm:$0x1]
        %v728 = vpack.c.bf16 %v719, %v719
        %v733 = vunpack.c.l.b16 %v724
        %v734 = vunpack.c.l.b16 %v725
        %v735 = vunpack.c.l.b16 %v726
        %v736 = vunpack.c.l.b16 %v727
        %v737 = vpack.c.b16 %v734, %v733
        %v738 = vpack.c.b16 %v736, %v735
        %v740 = vsel %vm579, %v737, 0
        %v743 = vsel %vm579, %v738, 0
        %v746 = vsel %vm586, %v728, 0
        %748 = vmatprep.subr.bf16.mxu0 0
        %749 = vmatpush1.bf16.msra.mxu0 0
        %750 = vmatprep.subr.bf16.mxu0 0
        %751 = vmatpush1.bf16.msra.mxu0 0
        %752 = vmatprep.subr.bf16.mxu0 0
        %753 = vmatpush1.bf16.msra.mxu0 0
        %754 = vmatprep.subr.bf16.mxu0 0
        %755 = vmatpush1.bf16.msra.mxu0 0
        %756 = vmatprep.subr.bf16.mxu0 0
        %757 = vmatpush1.bf16.msra.mxu0 0
        %758 = vmatprep.subr.bf16.mxu0 0
        %759 = vmatpush1.bf16.msra.mxu0 0
        %760 = vmatprep.subr.bf16.mxu0 0
        %761 = vmatpush1.bf16.msra.mxu0 0
        %762 = vmatprep.subr.bf16.mxu0 0
        %763 = vmatpush1.bf16.msra.mxu0 %v746
        %764 = vmatprep.subr.bf16.mxu0 0
        %765 = vmatpush2.bf16.msra.mxu0 0
        %766 = vmatprep.subr.bf16.mxu0 0
        %767 = vmatpush2.bf16.msra.mxu0 0
        %768 = vmatprep.subr.bf16.mxu0 0
        %769 = vmatpush2.bf16.msra.mxu0 0
        %770 = vmatprep.subr.bf16.mxu0 0
        %771 = vmatpush2.bf16.msra.mxu0 0
        %772 = vmatprep.subr.bf16.mxu0 0
        %773 = vmatpush2.bf16.msra.mxu0 0
        %774 = vmatprep.subr.bf16.mxu0 0
        %775 = vmatpush2.bf16.msra.mxu0 0
        %776 = vmatprep.subr.bf16.mxu0 0
        %777 = vmatpush2.bf16.msra.mxu0 0
        %778 = vmatprep.subr.bf16.mxu0 0
        %779 = vmatpush2.bf16.msra.mxu0 0
        %780 = vmatprep.mubr.bf16.mxu0 0
        %781 = vmatmul.mubr.bf16.gmra.mxu0 %v740
        %v782 = vpop.f32.mrf.mxu0
        %v783 = vadd.f32 0.0, %v782
        %v784 = vpop.f32.mrf.mxu0
        %v785 = vpop.f32.mrf.mxu0
        %v786 = vadd.f32 0.0, %v785
        %v787 = vpop.f32.mrf.mxu0
        %788 = vmatprep.mubr.bf16.mxu0 0
        %789 = vmatmul.mubr.bf16.gmra.mxu0 %v743
        %v790 = vpop.f32.mrf.mxu0
        %v791 = vadd.f32 0.0, %v790
        %v792 = vpop.f32.mrf.mxu0
        %v793 = vpop.f32.mrf.mxu0
        %v794 = vadd.f32 0.0, %v793
        %v795 = vpop.f32.mrf.mxu0
        %796 = vdwg.mxu0
        %v797 = vmul.f32 %v500, %v783
        %v798 = vmul.f32 %v501, %v786
        %v799 = vmul.f32 %v502, %v791
        %v800 = vmul.f32 %v503, %v794
        %v801 = vadd.f32 %v797, %v671
        %v802 = vadd.f32 %v798, %v672
        %v803 = vadd.f32 %v799, %v673
        %v804 = vadd.f32 %v800, %v674
        %v805 = vld [vmem:[%s6] sm:$0xff]
        %v806 = vld [vmem:[%s6 + $0x8] sm:$0xff]
        %v807 = vld [vmem:[%s6 + $0x10] sm:$0xff]
        %v808 = vld [vmem:[%s6 + $0x18] sm:$0x3]
        %810 = vset.pattern.permute.xlu0 0
        %811 = vperm.xlu0 %810, %v805
        %v812 = vpop.permute.xlu0 %811
        %815 = vset.pattern.permute.xlu0 0
        %816 = vperm.xlu0 %815, %v806
        %v817 = vpop.permute.xlu0 %816
        %820 = vset.pattern.permute.xlu0 0
        %821 = vperm.xlu0 %820, %v807
        %v822 = vpop.permute.xlu0 %821
        %825 = vset.pattern.permute.xlu0 0
        %826 = vperm.xlu0 %825, %v808
        %v827 = vpop.permute.xlu0 %826
        %v829 = vadd.f32 %v801, %v812
        %v830 = vadd.f32 %v802, %v817
        %v831 = vadd.f32 %v803, %v822
        %v832 = vadd.f32 %v804, %v827
        %v833 = vld [vmem:[%s7] sm:$0xf]
        %v834 = vld [vmem:[%s7 + $0x4] sm:$0xf]
        %v835 = vld [vmem:[%s7 + $0x8] sm:$0xf]
        %v836 = vld [vmem:[%s7 + $0xc] sm:$0xf]
        %v837 = vpack.c.bf16 %v830, %v829
        %v838 = vpack.c.bf16 %v832, %v831
        %v839 = vld [vmem:[%s8] sm:$0xff]
        %v840 = vld [vmem:[%s8 + $0x8] sm:$0xff]
        %v841 = vld [vmem:[%s8 + $0x10] sm:$0xff]
        %v842 = vld [vmem:[%s8 + $0x18] sm:$0xff]
        %844 = vset.pattern.permute.xlu0 0
        %845 = vperm.xlu0 %844, %v839
        %v846 = vpop.permute.xlu0 %845
        %849 = vset.pattern.permute.xlu0 0
        %850 = vperm.xlu0 %849, %v840
        %v851 = vpop.permute.xlu0 %850
        %854 = vset.pattern.permute.xlu0 0
        %855 = vperm.xlu0 %854, %v841
        %v856 = vpop.permute.xlu0 %855
        %859 = vset.pattern.permute.xlu0 0
        %860 = vperm.xlu0 %859, %v842
        %v861 = vpop.permute.xlu0 %860
        %v867 = vunpack.c.l.b16 %v833
        %v868 = vunpack.c.l.b16 %v834
        %v869 = vunpack.c.l.b16 %v835
        %v870 = vunpack.c.l.b16 %v836
        %v871 = vpack.c.b16 %v868, %v867
        %v872 = vpack.c.b16 %v870, %v869
        %v874 = vsel %vm516, %v871, 0
        %v877 = vsel %vm516, %v872, 0
        %v880 = vsel %vm520, %v838, 0
        %882 = vmatprep.subr.bf16.mxu0 0
        %883 = vmatpush1.bf16.msra.mxu0 0
        %884 = vmatprep.subr.bf16.mxu0 0
        %885 = vmatpush1.bf16.msra.mxu0 0
        %886 = vmatprep.subr.bf16.mxu0 0
        %887 = vmatpush1.bf16.msra.mxu0 0
        %888 = vmatprep.subr.bf16.mxu0 0
        %889 = vmatpush1.bf16.msra.mxu0 0
        %890 = vmatprep.subr.bf16.mxu0 0
        %891 = vmatpush1.bf16.msra.mxu0 0
        %892 = vmatprep.subr.bf16.mxu0 0
        %893 = vmatpush1.bf16.msra.mxu0 0
        %894 = vmatprep.subr.bf16.mxu0 0
        %895 = vmatpush1.bf16.msra.mxu0 %v880
        %896 = vmatprep.subr.bf16.mxu0 0
        %897 = vmatpush1.bf16.msra.mxu0 %v837
        %898 = vmatprep.subr.bf16.mxu0 0
        %899 = vmatpush2.bf16.msra.mxu0 0
        %900 = vmatprep.subr.bf16.mxu0 0
        %901 = vmatpush2.bf16.msra.mxu0 0
        %902 = vmatprep.subr.bf16.mxu0 0
        %903 = vmatpush2.bf16.msra.mxu0 0
        %904 = vmatprep.subr.bf16.mxu0 0
        %905 = vmatpush2.bf16.msra.mxu0 0
        %906 = vmatprep.subr.bf16.mxu0 0
        %907 = vmatpush2.bf16.msra.mxu0 0
        %908 = vmatprep.subr.bf16.mxu0 0
        %909 = vmatpush2.bf16.msra.mxu0 0
        %910 = vmatprep.subr.bf16.mxu0 0
        %911 = vmatpush2.bf16.msra.mxu0 0
        %912 = vmatprep.subr.bf16.mxu0 0
        %913 = vmatpush2.bf16.msra.mxu0 0
        %914 = vmatprep.mubr.bf16.mxu0 0
        %915 = vmatmul.mubr.bf16.gmra.mxu0 %v874
        %v916 = vpop.f32.mrf.mxu0
        %v917 = vadd.f32 %v846, %v916
        %v918 = vpop.f32.mrf.mxu0
        %v919 = vpop.f32.mrf.mxu0
        %v920 = vadd.f32 %v851, %v919
        %v921 = vpop.f32.mrf.mxu0
        %922 = vmatprep.mubr.bf16.mxu0 0
        %923 = vmatmul.mubr.bf16.gmra.mxu0 %v877
        %v924 = vpop.f32.mrf.mxu0
        %v925 = vadd.f32 %v856, %v924
        %v926 = vpop.f32.mrf.mxu0
        %v927 = vpop.f32.mrf.mxu0
        %v928 = vadd.f32 %v861, %v927
        %v929 = vpop.f32.mrf.mxu0
        %930 = vdwg.mxu0
        %v931 = vmax.f32 %v917, 0.0
        %v932 = vmax.f32 %v920, 0.0
        %v933 = vmax.f32 %v925, 0.0
        %v934 = vmax.f32 %v928, 0.0
        %v935 = vld [vmem:[%s9] sm:$0xf]
        %v936 = vld [vmem:[%s9 + $0x4] sm:$0xf]
        %v937 = vpack.c.bf16 %v932, %v931
        %v938 = vpack.c.bf16 %v934, %v933
        %v939 = vld [vmem:[%s10] sm:$0xff]
        %v940 = vld [vmem:[%s10 + $0x8] sm:$0xff]
        %942 = vset.pattern.permute.xlu0 0
        %943 = vperm.xlu0 %942, %v939
        %v944 = vpop.permute.xlu0 %943
        %947 = vset.pattern.permute.xlu0 0
        %948 = vperm.xlu0 %947, %v940
        %v949 = vpop.permute.xlu0 %948
        %v953 = vunpack.c.l.b16 %v935
        %v954 = vunpack.c.l.b16 %v936
        %v955 = vpack.c.b16 %v954, %v953
        %vm956 = vcmask 261120
        %v958 = vsel %vm956, %v955, 0
        %960 = vmatprep.subr.bf16.mxu0 0
        %961 = vmatpush1.bf16.msra.mxu0 0
        %962 = vmatprep.subr.bf16.mxu0 0
        %963 = vmatpush1.bf16.msra.mxu0 0
        %964 = vmatprep.subr.bf16.mxu0 0
        %965 = vmatpush1.bf16.msra.mxu0 0
        %966 = vmatprep.subr.bf16.mxu0 0
        %967 = vmatpush1.bf16.msra.mxu0 0
        %968 = vmatprep.subr.bf16.mxu0 0
        %969 = vmatpush1.bf16.msra.mxu0 0
        %970 = vmatprep.subr.bf16.mxu0 0
        %971 = vmatpush1.bf16.msra.mxu0 0
        %972 = vmatprep.subr.bf16.mxu0 0
        %973 = vmatpush1.bf16.msra.mxu0 %v938
        %974 = vmatprep.subr.bf16.mxu0 0
        %975 = vmatpush1.bf16.msra.mxu0 %v937
        %976 = vmatprep.subr.bf16.mxu0 0
        %977 = vmatpush2.bf16.msra.mxu0 0
        %978 = vmatprep.subr.bf16.mxu0 0
        %979 = vmatpush2.bf16.msra.mxu0 0
        %980 = vmatprep.subr.bf16.mxu0 0
        %981 = vmatpush2.bf16.msra.mxu0 0
        %982 = vmatprep.subr.bf16.mxu0 0
        %983 = vmatpush2.bf16.msra.mxu0 0
        %984 = vmatprep.subr.bf16.mxu0 0
        %985 = vmatpush2.bf16.msra.mxu0 0
        %986 = vmatprep.subr.bf16.mxu0 0
        %987 = vmatpush2.bf16.msra.mxu0 0
        %988 = vmatprep.subr.bf16.mxu0 0
        %989 = vmatpush2.bf16.msra.mxu0 0
        %990 = vmatprep.subr.bf16.mxu0 0
        %991 = vmatpush2.bf16.msra.mxu0 0
        %992 = vmatprep.mubr.bf16.mxu0 0
        %993 = vmatmul.mubr.bf16.gmra.mxu0 %v958
        %v994 = vpop.f32.mrf.mxu0
        %v995 = vadd.f32 %v944, %v994
        %v996 = vpop.f32.mrf.mxu0
        %v997 = vpop.f32.mrf.mxu0
        %v998 = vadd.f32 %v949, %v997
        %v999 = vpop.f32.mrf.mxu0
        %1000 = vdwg.mxu0
        %v1001 = vmax.f32 %v995, 0.0
        %v1002 = vmax.f32 %v998, 0.0
        %v1003 = vld [vmem:[%s11] sm:$0xff]
        %v1004 = vld [vmem:[%s11 + $0x8] sm:$0xff]
        %1006 = vset.pattern.permute.xlu0 0
        %1007 = vperm.xlu0 %1006, %v1003
        %v1008 = vpop.permute.xlu0 %1007
        %1011 = vset.pattern.permute.xlu0 0
        %1012 = vperm.xlu0 %1011, %v1004
        %v1013 = vpop.permute.xlu0 %1012
        %v1015 = vmul.f32 %v1001, %v1008
        %v1016 = vmul.f32 %v1002, %v1013
        %v1017 = vadd.f32 %v1015, %v1016
        %v1018 = vrot.slane %v1017, 4
        %v1019 = vadd.f32 %v1017, %v1018
        %v1020 = vrot.slane %v1019, 2
        %v1021 = vadd.f32 %v1019, %v1020
        %v1022 = vrot.slane %v1021, 1
        %v1023 = vadd.f32 %v1021, %v1022
        %v1024 = vld [vmem:[#allocation2] sm:$0x1]
        %1026 = vset.pattern.permute.xlu0 0
        %1027 = vperm.xlu0 %1026, %v1024
        %v1028 = vpop.permute.xlu0 %1027
        %v1030 = vlaneseq
        %v1031 = vshrl.u32 %v1030, 7
        %v1032 = vsub.s32 0, %v1031
        %v1033 = vrot.slane %v1028, %v1032
        %v1034 = vadd.f32 %v1023, %v1033
        %v1035 = vxor.u32 %v1034, 2147483648
        %v1036 = vmul.f32 %v1035, 1.442695
        %v1037 = vpow.pop %v1036
        %v1038 = vadd.f32 %v1037, 1.0
        %v1039 = vrcp.pop %v1038
        %v1040 = vmul.f32 1.0, %v1039
        %1041 = vst [vmem:[%s494] sm:$0x1] %v1040
        %s1042 = sand.u32 %s315, 1
        %s1043 = scalar_lea.sflag [#allocation5], %s1042
        %s1044 = sand.u32 %s315, 1
        %s1045 = scalar_lea.vmem [#allocation4], %s1044
        // Predicated region
        $region114: #{dcnv2_forward.1} parent=108 // pred_check
          %p1046 = pneg %p325
        $region115: #{dcnv2_forward.1} parent=108 // pred_check_branch
          %1048 = sbr.rel (%p1046) target = $region117
        $region116: #{dcnv2_forward.1} parent=108 // pred_region
          %s1050 = ssub.s32 16, 16
          %1051 = vsyncadd %s1043, %s1050
          %s1052 = smul.addr %s29, 16
          %s1053 = scalar_lea.hbm %s13, %s1052
          %s1055 = sshll.u32 %s1045, 4
          %s1056 = int_to_ptr.vmem [resolvable:$true] %s1055
          %1058 = dma.vmem_to_hbm [thread:$0]  %s1056, 16, %s1053, %s1043
        $region117: #{dcnv2_forward.1} parent=108 // pred_fallthru
          _
      $region109: #{dcnv2_forward.1} parent=5 // pred_fallthru
        _
      %p1059 = scmp.le.s32.totalorder 2, %s24
      // Predicated region
      $region118: #{dcnv2_forward.1} parent=5 // pred_check
        %p1060 = pneg %p1059
      $region119: #{dcnv2_forward.1} parent=5 // pred_check_branch
        %1062 = sbr.rel (%p1060) target = $region121
      $region120: #{dcnv2_forward.1} parent=5 // pred_region
        %s1063 = ssub.s32 %s24, 2
        // Predicated region
        $region122: #{dcnv2_forward.1} parent=120 // pred_check
          %p1064 = pneg %p331
        $region123: #{dcnv2_forward.1} parent=120 // pred_check_branch
          %1066 = sbr.rel (%p1064) target = $region125
        $region124: #{dcnv2_forward.1} parent=120 // pred_region
          %s1067 = sand.u32 %s316, 1
          %s1068 = scalar_lea.sflag [#allocation5], %s1067
          %s1069 = sand.u32 %s316, 1
          %s1070 = scalar_lea.vmem [#allocation4], %s1069
          %1071 = dma.done %s1068, 16
        $region125: #{dcnv2_forward.1} parent=120 // pred_fallthru
          _
      $region121: #{dcnv2_forward.1} parent=5 // pred_fallthru
        _
    $region6: #{dcnv2_forward.1} parent=1 // loop_footer
      %s28 = sadd.s32 1, %s24
    $region7: #{dcnv2_forward.1} parent=1 // loop_footer_branch
      %23 = sbr.rel target = $region3
    $region8: #{dcnv2_forward.1} parent=1 // loop_exit
      _
    %1072 = vsyncpa [#allocation5], 1
    %s1073 = scalar_lea.sflag [#allocation5], 1
    %1074 = vsyncpa %s1073, 1

</llo_original>
